<compile_context>
chip_gen: v7x
topology: tpu7x:2x2x1
jax: 0.10.0
libtpu: 0.0.40
codegen_flags: <defaults>
</compile_context>

<pallas_src>
import jax
import jax.numpy as jnp
from jax import lax
from jax.experimental import pallas as pl
from jax.experimental.pallas import tpu as pltpu

LEAKY_SLOPE = 0.01   # F.leaky_relu default negative_slope
NORM_EPS = 1e-12     # F.normalize default eps


def _round_up(x, m):
    return ((x + m - 1) // m) * m


def _vmem_budget_bytes():
    """~3/4 of physical VMEM: ~96 MiB on v5e/v6e (128 MiB), ~48 MiB on v7x (64 MiB)."""
    try:
        cap = int(pltpu.get_tpu_info().vmem_capacity_bytes)
    except Exception:
        cap = 64 * 1024 * 1024  # conservative fallback (v7x per-TensorCore VMEM)
    return (cap * 3) // 4


def mlp_one_layer_kernel(x_ref, w_ref, b_ref, o_ref, acc_ref):
    k = pl.program_id(1)

    @pl.when(k == 0)
    def _():
        acc_ref[...] = jnp.zeros_like(acc_ref)

    # MXU matmul in the operand dtype (bf16 when requested), f32 accumulation.
    acc_ref[...] += jnp.dot(x_ref[...], w_ref[...],
                            preferred_element_type=jnp.float32)

    @pl.when(k == pl.num_programs(1) - 1)
    def _():
        y = acc_ref[...] + b_ref[...].astype(jnp.float32)
        # leaky_relu (VPU)
        y = jnp.where(y >= 0, y, LEAKY_SLOPE * y)
        # dropout with p=0 (module default) is the identity.
        # TODO(synk): non-zero dropout would need pltpu.prng_seed/prng_random_bits masking.
        # F.normalize: y / max(||y||_2, eps) == y * rsqrt(max(sum(y^2), eps^2)).
        # Padded output lanes are exactly zero, so the row norm is unaffected.
        sumsq = jnp.sum(y * y, axis=-1, keepdims=True)
        inv = lax.rsqrt(jnp.maximum(sumsq, NORM_EPS * NORM_EPS))   # EUP, free VLIW slot
        o_ref[...] = (y * inv).astype(o_ref.dtype)
        # TODO(synk): for very large D_out add an N tile with a two-pass norm (accumulate
        # per-row sum(y*y) across N tiles in a (TB,1) scratch) instead of shrinking TB.


def mlp_one_layer(x, w, b, *, block_b=512, mxu_dtype=None, min_batch_blocks=2):
    """y = l2_normalize(leaky_relu(x @ w + b)), row-wise.

    block_b:          target batch rows per grid step.
    mxu_dtype:        operand dtype for the MXU dot (e.g. jnp.bfloat16 on v6e/v7x);
                      None keeps the input dtype. Accumulation/epilogue stay f32 and the
                      output keeps x.dtype either way.
    min_batch_blocks: minimum number of batch grid blocks when B is large enough
                      (>=2 keeps both v7x TensorCores busy; harmless extra grid step on
                      single-TC v5e/v6e).
    """
    B, D_in = x.shape
    D_in_w, D_out = w.shape
    assert D_in == D_in_w and b.shape == (D_out,)

    op_dtype = jnp.dtype(mxu_dtype) if mxu_dtype is not None else x.dtype
    sublane = 16 if op_dtype.itemsize == 2 else 8

    # Lane / contraction padding to multiples of 128 (zeros: exact for matmul & norm).
    D_out_p = _round_up(D_out, 128)
    D_in_p = _round_up(D_in, 128)

    # Balanced batch tiles: padding <= a few rows instead of up to TB-1 rows.
    nb = pl.cdiv(B, block_b)
    if B >= min_batch_blocks * sublane:
        nb = max(nb, min_batch_blocks)
    TB = _round_up(pl.cdiv(B, nb), sublane)

    # Fit the working set under an explicit VMEM budget (every block is double-buffered,
    # plus the f32 accumulator scratch).
    vmem_budget = _vmem_budget_bytes()
    in_bytes = op_dtype.itemsize
    out_bytes = x.dtype.itemsize
    b_bytes = b.dtype.itemsize

    def footprint(tb, tk):
        return (2 * tb * tk * in_bytes            # x blocks
                + 2 * tk * D_out_p * in_bytes     # W blocks
                + 2 * 1 * D_out_p * b_bytes       # bias
                + 2 * tb * D_out_p * out_bytes    # output blocks
                + tb * D_out_p * 4)               # f32 accumulator scratch

    TK = D_in_p
    while footprint(TB, TK) > vmem_budget and TK > 128:
        TK = max(128, _round_up(TK // 2, 128))
    while footprint(TB, TK) > vmem_budget and TB > sublane:
        TB = max(sublane, _round_up(TB // 2, sublane))

    nb = pl.cdiv(B, TB)
    B_p = nb * TB
    nk = pl.cdiv(D_in_p, TK)
    K_p = nk * TK

    # Pad only when needed (skips wrapper-side HBM copies for aligned shapes).
    if B_p != B or K_p != D_in:
        x_p = jnp.pad(x, ((0, B_p - B), (0, K_p - D_in)))
    else:
        x_p = x
    if K_p != D_in or D_out_p != D_out:
        w_p = jnp.pad(w, ((0, K_p - D_in), (0, D_out_p - D_out)))
    else:
        w_p = w
    b_p = (b if D_out_p == D_out else jnp.pad(b, (0, D_out_p - D_out))).reshape(1, D_out_p)

    if x_p.dtype != op_dtype:
        x_p = x_p.astype(op_dtype)
    if w_p.dtype != op_dtype:
        w_p = w_p.astype(op_dtype)

    flops = 2 * B_p * K_p * D_out_p
    bytes_accessed = (x_p.size * x_p.dtype.itemsize
                      + w_p.size * w_p.dtype.itemsize
                      + b_p.size * b_p.dtype.itemsize
                      + B_p * D_out_p * x.dtype.itemsize)

    out_p = pl.pallas_call(
        mlp_one_layer_kernel,
        out_shape=jax.ShapeDtypeStruct((B_p, D_out_p), x.dtype),
        grid=(nb, nk),
        in_specs=[
            pl.BlockSpec((TB, TK), lambda i, k: (i, k)),        # x: tiled over batch & K
            pl.BlockSpec((TK, D_out_p), lambda i, k: (k, 0)),   # W: streamed over K
            pl.BlockSpec((1, D_out_p), lambda i, k: (0, 0)),    # bias: VMEM-resident
        ],
        out_specs=pl.BlockSpec((TB, D_out_p), lambda i, k: (i, 0)),
        scratch_shapes=[pltpu.VMEM((TB, D_out_p), jnp.float32)],
        compiler_params=pltpu.CompilerParams(
            dimension_semantics=("parallel", "arbitrary"),
            vmem_limit_bytes=int(vmem_budget)),
        cost_estimate=pl.CostEstimate(
            flops=flops, transcendentals=B_p, bytes_accessed=bytes_accessed),
    )(x_p, w_p, b_p)

    if B_p == B and D_out_p == D_out:
        return out_p
    return out_p[:B, :D_out]


def reference(x, w, b):
    y = x @ w + b
    y = jnp.where(y >= 0, y, LEAKY_SLOPE * y)
    n = jnp.sqrt(jnp.sum(y * y, axis=-1, keepdims=True))
    return y / jnp.maximum(n, NORM_EPS)


if __name__ == "__main__":
    # Small shapes consistent with the module: batch=8, input_size=32, output_size=64.
    # (Note: at this size the call is pure fixed overhead; the tiling logic targets the
    #  hundreds-to-thousands regime.)
    B, INPUT_SIZE, OUTPUT_SIZE = 8, 32, 64

    key = jax.random.PRNGKey(0)
    kx, kw, kb = jax.random.split(key, 3)

    x = jax.random.normal(kx, (B, INPUT_SIZE), dtype=jnp.float32)

    # Deterministic parameter init mimicking nn.Linear's U(-1/sqrt(in), 1/sqrt(in)).
    bound = 1.0 / (INPUT_SIZE ** 0.5)
    w = jax.random.uniform(kw, (INPUT_SIZE, OUTPUT_SIZE), dtype=jnp.float32,
                           minval=-bound, maxval=bound)
    b = jax.random.uniform(kb, (OUTPUT_SIZE,), dtype=jnp.float32,
                           minval=-bound, maxval=bound)

    # Exact-dtype path (semantics identical to the PyTorch module in f32).
    out = jax.block_until_ready(mlp_one_layer(x, w, b))
    ref = reference(x, w, b)
    assert out.shape == (B, OUTPUT_SIZE)
    assert jnp.allclose(out, ref, atol=1e-5, rtol=1e-5), "f32 mismatch vs reference"

    # bf16 MXU path (recommended on v6e/v7x): bf16 operands, f32 accumulation + f32 epilogue.
    out_bf16 = jax.block_until_ready(mlp_one_layer(x, w, b, mxu_dtype=jnp.bfloat16))
    ref_bf16 = reference(x.astype(jnp.bfloat16).astype(jnp.float32),
                         w.astype(jnp.bfloat16).astype(jnp.float32), b)
    assert out_bf16.shape == (B, OUTPUT_SIZE)
    assert jnp.allclose(out_bf16, ref_bf16, atol=2e-2, rtol=2e-2), "bf16 mismatch vs reference"

    print("KERNEL_OK")
</pallas_src>

<mosaic_0001>
module attributes {stable_mosaic.version = 11 : i64} {
  func.func @mlp_one_layer_kernel(%arg0: i32, %arg1: i32, %arg2: memref<8x128xf32, #tpu.memory_space<vmem>>, %arg3: memref<128x128xf32, #tpu.memory_space<vmem>>, %arg4: memref<1x128xf32, #tpu.memory_space<vmem>>, %arg5: memref<8x128xf32, #tpu.memory_space<vmem>>, %arg6: memref<8x128xf32, #tpu.memory_space<vmem>>) attributes {dimension_semantics = [#tpu.dimension_semantics<parallel>, #tpu.dimension_semantics<arbitrary>], iteration_bounds = array<i64: 1, 1>, scalar_prefetch = 0 : i64, scratch_operands = 1 : i64, tpu.core_type = #tpu.core_type<tc>, window_params = [{transform_indices = @transform_0, window_bounds = array<i64: 8, 128>}, {transform_indices = @transform_1, window_bounds = array<i64: 128, 128>}, {pipeline_mode = #tpu.pipeline_mode<synchronous>, transform_indices = @transform_2, window_bounds = array<i64: 1, 128>}, {transform_indices = @transform_3, window_bounds = array<i64: 8, 128>}]} {
    %c0_i32 = arith.constant 0 : i32
    %0 = arith.cmpi eq, %arg1, %c0_i32 : i32
    %1 = arith.extui %0 : i1 to i32
    %c0_i32_0 = arith.constant 0 : i32
    %2 = arith.cmpi ne, %1, %c0_i32_0 : i32
    scf.if %2 {
      %cst_10 = arith.constant 0.000000e+00 : f32
      %12 = vector.broadcast %cst_10 : f32 to vector<8x128xf32>
      %c0_11 = arith.constant 0 : index
      %c0_12 = arith.constant 0 : index
      %13 = vector.load %arg6[%c0_11, %c0_12] : memref<8x128xf32, #tpu.memory_space<vmem>>, vector<8x128xf32>
      tpu.vector_store %arg6[%c0_11, %c0_12], %12 {strides = array<i32>} : memref<8x128xf32, #tpu.memory_space<vmem>>, vector<8x128xf32>,
    } else {
    }
    %c0 = arith.constant 0 : index
    %c0_1 = arith.constant 0 : index
    %3 = vector.load %arg6[%c0, %c0_1] : memref<8x128xf32, #tpu.memory_space<vmem>>, vector<8x128xf32>
    %c0_2 = arith.constant 0 : index
    %c0_3 = arith.constant 0 : index
    %4 = vector.load %arg2[%c0_2, %c0_3] : memref<8x128xf32, #tpu.memory_space<vmem>>, vector<8x128xf32>
    %c0_4 = arith.constant 0 : index
    %c0_5 = arith.constant 0 : index
    %5 = vector.load %arg3[%c0_4, %c0_5] : memref<128x128xf32, #tpu.memory_space<vmem>>, vector<128x128xf32>
    %cst = arith.constant dense<0.000000e+00> : vector<8x128xf32>
    %6 = tpu.matmul %4, %5, %cst {dimension_numbers = #tpu.dot_dimension_numbers<[1], [0], [0], [1], [0, 0, 1, 1], [], []>} : vector<8x128xf32>, vector<128x128xf32>, vector<8x128xf32> -> vector<8x128xf32>
    %7 = arith.addf %3, %6 : vector<8x128xf32>
    %c0_6 = arith.constant 0 : index
    %c0_7 = arith.constant 0 : index
    %8 = vector.load %arg6[%c0_6, %c0_7] : memref<8x128xf32, #tpu.memory_space<vmem>>, vector<8x128xf32>
    tpu.vector_store %arg6[%c0_6, %c0_7], %7 {strides = array<i32>} : memref<8x128xf32, #tpu.memory_space<vmem>>, vector<8x128xf32>,
    %c0_i32_8 = arith.constant 0 : i32
    %9 = arith.cmpi eq, %arg1, %c0_i32_8 : i32
    %10 = arith.extui %9 : i1 to i32
    %c0_i32_9 = arith.constant 0 : i32
    %11 = arith.cmpi ne, %10, %c0_i32_9 : i32
    scf.if %11 {
      %c0_10 = arith.constant 0 : index
      %c0_11 = arith.constant 0 : index
      %12 = vector.load %arg6[%c0_10, %c0_11] : memref<8x128xf32, #tpu.memory_space<vmem>>, vector<8x128xf32>
      %c0_12 = arith.constant 0 : index
      %c0_13 = arith.constant 0 : index
      %13 = vector.load %arg4[%c0_12, %c0_13] : memref<1x128xf32, #tpu.memory_space<vmem>>, vector<1x128xf32>
      %14 = vector.broadcast %13 : vector<1x128xf32> to vector<8x128xf32>
      %15 = arith.addf %12, %14 : vector<8x128xf32>
      %cst_14 = arith.constant 0.000000e+00 : f32
      %16 = vector.broadcast %cst_14 : f32 to vector<8x128xf32>
      %17 = arith.cmpf oge, %15, %16 : vector<8x128xf32>
      %cst_15 = arith.constant 0.00999999977 : f32
      %18 = vector.broadcast %cst_15 : f32 to vector<8x128xf32>
      %19 = arith.mulf %18, %15 : vector<8x128xf32>
      %20 = arith.select %17, %15, %19 : vector<8x128xi1>, vector<8x128xf32>
      %21 = arith.mulf %20, %20 : vector<8x128xf32>
      %cst_16 = arith.constant dense<0.000000e+00> : vector<8xf32>
      %22 = vector.multi_reduction <add>, %21, %cst_16 [1] : vector<8x128xf32> to vector<8xf32>
      %23 = vector.shape_cast %22 : vector<8xf32> to vector<8x1xf32>
      %cst_17 = arith.constant 1.000000e-24 : f32
      %24 = vector.broadcast %cst_17 : f32 to vector<8x1xf32>
      %25 = arith.maximumf %23, %24 : vector<8x1xf32>
      %26 = math.rsqrt %25 : vector<8x1xf32>
      %27 = vector.broadcast %26 : vector<8x1xf32> to vector<8x128xf32>
      %28 = arith.mulf %20, %27 : vector<8x128xf32>
      %c0_18 = arith.constant 0 : index
      %c0_19 = arith.constant 0 : index
      %29 = vector.load %arg5[%c0_18, %c0_19] : memref<8x128xf32, #tpu.memory_space<vmem>>, vector<8x128xf32>
      tpu.vector_store %arg5[%c0_18, %c0_19], %28 {strides = array<i32>} : memref<8x128xf32, #tpu.memory_space<vmem>>, vector<8x128xf32>,
    } else {
    }
    return
  }
  func.func @transform_0(%arg0: i32, %arg1: i32) -> (i32, i32) {
    %c0_i32 = arith.constant 0 : i32
    return %arg0, %arg1 : i32, i32
  }
  func.func @transform_1(%arg0: i32, %arg1: i32) -> (i32, i32) {
    %c0_i32 = arith.constant 0 : i32
    %c0_i32_0 = arith.constant 0 : i32
    return %arg1, %c0_i32 : i32, i32
  }
  func.func @transform_2(%arg0: i32, %arg1: i32) -> (i32, i32) {
    %c0_i32 = arith.constant 0 : i32
    %c0_i32_0 = arith.constant 0 : i32
    %c0_i32_1 = arith.constant 0 : i32
    return %c0_i32, %c0_i32_0 : i32, i32
  }
  func.func @transform_3(%arg0: i32, %arg1: i32) -> (i32, i32) {
    %c0_i32 = arith.constant 0 : i32
    %c0_i32_0 = arith.constant 0 : i32
    return %arg0, %c0_i32 : i32, i32
  }
}

</mosaic_0001>

<llo_original>
// kernel: tpu_custom_call.1
$region0: #{tpu_custom_call.1}
  #allocation0 [shape = 'u32[]', space=smem, size = 0x4, offset = 0x4, fixed_abs, tag = 'smem constant byte address 0x4 - core index']
  #allocation1 [shape = 'u32[144,128]{1,0:T(1,128)}', space=vmem, size = 0x12000, scoped, tag = 'internal scratch']
  #allocation2 [shape = 'f32[8,128]{1,0:T(8,128)}', space=vmem, size = 0x1000, scoped, tag = 'scratch operand']
  %s0 = inlined_call_operand.hbm [shape: f32[8,128], index: 0, kind: input, shape index: {}]
  %s1 = inlined_call_operand.hbm [shape: f32[128,128], index: 1, kind: input, shape index: {}]
  %s2 = inlined_call_operand.vmem [shape: f32[1,128], index: 2, kind: input, shape index: {}]
  %s3 = inlined_call_operand.hbm [shape: f32[8,128], index: 3, kind: output, shape index: {}]
  %s4 = sld [smem:[#allocation0]]
  $region38: #{tpu_custom_call.1} parent=0
    _
  %s6 = ssub.s32 1, %s4
  %s7 = scalar_select 0, %s6, %s4
  $region1: #{tpu_custom_call.1} parent=0
    #allocation3 [shape = 'u8[4096]{0}', space=vmem, size = 0x1000, scoped, tag = 'input window, operand 0, single buffered']
    #allocation4 [shape = 's32[1]{0}', space=sflag, size = 0x4, scoped, tag = 'scoped memory for tpu_custom_call.1']
    #allocation5 [shape = 's32[1]{0}', space=sflag, size = 0x4, scoped, tag = 'scoped memory for tpu_custom_call.1']
    #allocation6 [shape = 'u8[65536]{0}', space=vmem, size = 0x10000, scoped, tag = 'input window, operand 1, single buffered']
    #allocation7 [shape = 's32[1]{0}', space=sflag, size = 0x4, scoped, tag = 'scoped memory for tpu_custom_call.1']
    #allocation8 [shape = 'u8[4096]{0}', space=vmem, size = 0x1000, scoped, tag = 'output window, operand 0, single buffered']
    %8 = vsyncpa [#allocation4], 0
    %9 = vsyncpa [#allocation7], 0
    %10 = vsyncpa [#allocation5], 0
    // Predicated region
    $region2: #{tpu_custom_call.1} parent=1 // pred_check
      _
    $region3: #{tpu_custom_call.1} parent=1 // pred_check_branch
      %12 = sbr.rel (0) target = $region5
    $region4: #{tpu_custom_call.1} parent=1 // pred_region
      %s14 = ssub.s32 128, 128
      %15 = vsyncadd [#allocation4], %s14
      %s17 = sshll.u32 [#allocation3], 4
      %s18 = int_to_ptr.vmem [resolvable:$true] %s17
      %20 = dma.hbm_to_vmem [thread:$0]  %s0, 128, %s18, [#allocation4]
    $region5: #{tpu_custom_call.1} parent=1 // pred_fallthru
      _
    // Predicated region
    $region6: #{tpu_custom_call.1} parent=1 // pred_check
      _
    $region7: #{tpu_custom_call.1} parent=1 // pred_check_branch
      %22 = sbr.rel (0) target = $region9
    $region8: #{tpu_custom_call.1} parent=1 // pred_region
      %s24 = ssub.s32 2048, 2048
      %25 = vsyncadd [#allocation7], %s24
      %s26 = sshll.u32 [#allocation6], 4
      %s27 = int_to_ptr.vmem [resolvable:$true] %s26
      %32 = dma.hbm_to_vmem [thread:$0]  %s1, 2048, %s27, [#allocation7], 128, 128, 8
    $region9: #{tpu_custom_call.1} parent=1 // pred_fallthru
      _
    // Predicated region
    $region10: #{tpu_custom_call.1} parent=1 // pred_check
      _
    $region11: #{tpu_custom_call.1} parent=1 // pred_check_branch
      %34 = sbr.rel (0) target = $region13
    $region12: #{tpu_custom_call.1} parent=1 // pred_region
      _
    $region13: #{tpu_custom_call.1} parent=1 // pred_fallthru
      _
    // Predicated region
    $region14: #{tpu_custom_call.1} parent=1 // pred_check
      _
    $region15: #{tpu_custom_call.1} parent=1 // pred_check_branch
      %36 = sbr.rel (0) target = $region17
    $region16: #{tpu_custom_call.1} parent=1 // pred_region
      %37 = dma.done [#allocation4], 128
    $region17: #{tpu_custom_call.1} parent=1 // pred_fallthru
      _
    // Predicated region
    $region18: #{tpu_custom_call.1} parent=1 // pred_check
      _
    $region19: #{tpu_custom_call.1} parent=1 // pred_check_branch
      %39 = sbr.rel (0) target = $region21
    $region20: #{tpu_custom_call.1} parent=1 // pred_region
      %40 = dma.done [#allocation7], 2048
    $region21: #{tpu_custom_call.1} parent=1 // pred_fallthru
      _
    %p41 = scmp.eq.s32.totalorder 0, 0
    // Predicated region
    $region22: #{tpu_custom_call.1} parent=1 // pred_check
      %p42 = pneg %p41
    $region23: #{tpu_custom_call.1} parent=1 // pred_check_branch
      %44 = sbr.rel (%p42) target = $region25
    $region24: #{tpu_custom_call.1} parent=1 // pred_region
      %45 = vst [vmem:[#allocation2] sm:$0xff] 0.0
    $region25: #{tpu_custom_call.1} parent=1 // pred_fallthru
      _
    %v46 = vld [vmem:[#allocation2] sm:$0xff]
    %v47 = vld [vmem:[#allocation3] sm:$0xff]
    %v48 = vld [vmem:[#allocation6] sm:$0xff]
    %v49 = vld [vmem:[#allocation6 + $0x8] sm:$0xff]
    %v50 = vld [vmem:[#allocation6 + $0x10] sm:$0xff]
    %v51 = vld [vmem:[#allocation6 + $0x18] sm:$0xff]
    %v52 = vld [vmem:[#allocation6 + $0x20] sm:$0xff]
    %v53 = vld [vmem:[#allocation6 + $0x28] sm:$0xff]
    %v54 = vld [vmem:[#allocation6 + $0x30] sm:$0xff]
    %v55 = vld [vmem:[#allocation6 + $0x38] sm:$0xff]
    %v56 = vld [vmem:[#allocation6 + $0x40] sm:$0xff]
    %v57 = vld [vmem:[#allocation6 + $0x48] sm:$0xff]
    %v58 = vld [vmem:[#allocation6 + $0x50] sm:$0xff]
    %v59 = vld [vmem:[#allocation6 + $0x58] sm:$0xff]
    %v60 = vld [vmem:[#allocation6 + $0x60] sm:$0xff]
    %v61 = vld [vmem:[#allocation6 + $0x68] sm:$0xff]
    %v62 = vld [vmem:[#allocation6 + $0x70] sm:$0xff]
    %v63 = vld [vmem:[#allocation6 + $0x78] sm:$0xff]
    %64 = vmatprep.subr.mxu0 0.0
    %65 = vmatpush1.msra.mxu0 %v48
    %66 = vmatprep.subr.mxu0 0.0
    %67 = vmatpush1.msra.mxu0 %v49
    %68 = vmatprep.subr.mxu0 0.0
    %69 = vmatpush1.msra.mxu0 %v50
    %70 = vmatprep.subr.mxu0 0.0
    %71 = vmatpush1.msra.mxu0 %v51
    %72 = vmatprep.subr.mxu0 0.0
    %73 = vmatpush1.msra.mxu0 %v52
    %74 = vmatprep.subr.mxu0 0.0
    %75 = vmatpush1.msra.mxu0 %v53
    %76 = vmatprep.subr.mxu0 0.0
    %77 = vmatpush1.msra.mxu0 %v54
    %78 = vmatprep.subr.mxu0 0.0
    %79 = vmatpush1.msra.mxu0 %v55
    %80 = vmatprep.subr.mxu0 0.0
    %81 = vmatpush1.msra.mxu0 %v56
    %82 = vmatprep.subr.mxu0 0.0
    %83 = vmatpush1.msra.mxu0 %v57
    %84 = vmatprep.subr.mxu0 0.0
    %85 = vmatpush1.msra.mxu0 %v58
    %86 = vmatprep.subr.mxu0 0.0
    %87 = vmatpush1.msra.mxu0 %v59
    %88 = vmatprep.subr.mxu0 0.0
    %89 = vmatpush1.msra.mxu0 %v60
    %90 = vmatprep.subr.mxu0 0.0
    %91 = vmatpush1.msra.mxu0 %v61
    %92 = vmatprep.subr.mxu0 0.0
    %93 = vmatpush1.msra.mxu0 %v62
    %94 = vmatprep.subr.mxu0 0.0
    %95 = vmatpush1.msra.mxu0 %v63
    %96 = vmatprep.subr.mxu0 0.0
    %97 = vmatpush1.msra.mxu0 0.0
    %98 = vmatprep.subr.mxu0 0.0
    %99 = vmatpush1.msra.mxu0 0.0
    %100 = vmatprep.subr.mxu0 0.0
    %101 = vmatpush1.msra.mxu0 0.0
    %102 = vmatprep.subr.mxu0 0.0
    %103 = vmatpush1.msra.mxu0 0.0
    %104 = vmatprep.subr.mxu0 0.0
    %105 = vmatpush1.msra.mxu0 0.0
    %106 = vmatprep.subr.mxu0 0.0
    %107 = vmatpush1.msra.mxu0 0.0
    %108 = vmatprep.subr.mxu0 0.0
    %109 = vmatpush1.msra.mxu0 0.0
    %110 = vmatprep.subr.mxu0 0.0
    %111 = vmatpush1.msra.mxu0 0.0
    %112 = vmatprep.subr.mxu0 0.0
    %113 = vmatpush1.msra.mxu0 0.0
    %114 = vmatprep.subr.mxu0 0.0
    %115 = vmatpush1.msra.mxu0 0.0
    %116 = vmatprep.subr.mxu0 0.0
    %117 = vmatpush1.msra.mxu0 0.0
    %118 = vmatprep.subr.mxu0 0.0
    %119 = vmatpush1.msra.mxu0 0.0
    %120 = vmatprep.subr.mxu0 0.0
    %121 = vmatpush1.msra.mxu0 0.0
    %122 = vmatprep.subr.mxu0 0.0
    %123 = vmatpush1.msra.mxu0 0.0
    %124 = vmatprep.subr.mxu0 0.0
    %125 = vmatpush1.msra.mxu0 0.0
    %126 = vmatprep.subr.mxu0 0.0
    %127 = vmatpush1.msra.mxu0 0.0
    %128 = vmatprep.mubr.f32.mxu0 0.0
    %129 = vmatmul.mubr.f32.gmra.mrb[0].mxu0 %v47
    %v130 = vpop.f32.mrb[0].mxu0
    %v131 = vadd.f32 0.0, %v130
    %v132 = vpop.f32.mrb[0].mxu0
    %133 = vdwg.mxu0
    %v134 = vadd.f32 %v46, %v131
    %135 = vst [vmem:[#allocation2] sm:$0xff] %v134
    // Predicated region
    $region26: #{tpu_custom_call.1} parent=1 // pred_check
      %p136 = pneg %p41
    $region27: #{tpu_custom_call.1} parent=1 // pred_check_branch
      %138 = sbr.rel (%p136) target = $region29
    $region28: #{tpu_custom_call.1} parent=1 // pred_region
      %v139 = vld [vmem:[#allocation2] sm:$0xff]
      %v140 = vld [vmem:[%s2] sm:$0x1]
      %v142 = vlaneseq
      %v143 = vshrl.u32 %v142, 7
      %v144 = vsub.s32 0, %v143
      %v145 = vrot.slane %v140, %v144
      %v147 = vadd.f32 %v139, %v145
      %vm148 = vcmp.ge.f32.partialorder %v147, 0.0
      %v149 = vmul.f32 %v147, 0.01
      %v150 = vsel %vm148, %v147, %v149
      %v151 = vmul.f32 %v150, %v150
      %152 = vadd.xlane.f32.xlu0 %v151
      %v153 = vpop.xlane.xlu0 %152
      %v154 = vmax.f32 %v153, 1e-24
      %v155 = vrsqrt.pop %v154
      %v156 = vmul.f32 %v150, %v155
      %157 = vst [vmem:[#allocation8] sm:$0xff] %v156
    $region29: #{tpu_custom_call.1} parent=1 // pred_fallthru
      _
    // Predicated region
    $region30: #{tpu_custom_call.1} parent=1 // pred_check
      _
    $region31: #{tpu_custom_call.1} parent=1 // pred_check_branch
      %159 = sbr.rel (0) target = $region33
    $region32: #{tpu_custom_call.1} parent=1 // pred_region
      %s161 = ssub.s32 128, 128
      %162 = vsyncadd [#allocation5], %s161
      %s164 = sshll.u32 [#allocation8], 4
      %s165 = int_to_ptr.vmem [resolvable:$true] %s164
      %167 = dma.vmem_to_hbm [thread:$0]  %s165, 128, %s3, [#allocation5]
    $region33: #{tpu_custom_call.1} parent=1 // pred_fallthru
      _
    // Predicated region
    $region34: #{tpu_custom_call.1} parent=1 // pred_check
      _
    $region35: #{tpu_custom_call.1} parent=1 // pred_check_branch
      %169 = sbr.rel (0) target = $region37
    $region36: #{tpu_custom_call.1} parent=1 // pred_region
      %170 = dma.done [#allocation5], 128
    $region37: #{tpu_custom_call.1} parent=1 // pred_fallthru
      _
    %171 = vsyncpa [#allocation4], 1
    %172 = vsyncpa [#allocation7], 1
    %173 = vsyncpa [#allocation5], 1

</llo_original>
